<compile_context>
chip_gen: v7x
topology: tpu7x:2x2x1
jax: 0.10.0
libtpu: 0.0.40
codegen_flags: <defaults>
</compile_context>

<pallas_src>
import functools

import jax
import jax.numpy as jnp
from jax import lax
from jax.experimental import pallas as pl
from jax.experimental.pallas import tpu as pltpu


# ----------------------------- config --------------------------------------
IMG = 16          # small spatial size (module default is 224)
PATCH = 7         # kernel_size of proj conv
STRIDE = 4
PAD = PATCH // 2  # = 3
IN_CH = 3
EMBED = 32        # small embed dim (module default is 768)
EPS = 1e-5        # PyTorch LayerNorm default


def _round_up(x, m):
    return (x + m - 1) // m * m


# --------------------------- Pallas kernels ---------------------------------
def _proj_matmul_kernel(p_ref, w_ref, b_ref, o_ref):
    # p_ref: (TM, Kp) bf16 im2col patch tile, w_ref: (Kp, Dp) bf16,
    # b_ref: (1, Dp) f32, o_ref: (TM, Dp) f32.  K fits in one block, so no
    # reduction grid axis / accumulator is needed; MXU accumulates in f32.
    o_ref[...] = (
        jnp.dot(p_ref[...], w_ref[...], preferred_element_type=jnp.float32)
        + b_ref[...]
    )


def _pos_layernorm_kernel(xpad_ref, dww_ref, dwb_ref, g_ref, b_ref, o_ref,
                          *, d_true):
    # xpad_ref: (1, H+2, W+2, Dp) zero-padded NHWC features (one image)
    # dww_ref : (9, Dp) depthwise 3x3 taps, row index = dy*3 + dx
    # dwb_ref : (1, Dp), g_ref/b_ref: (1, Dp) LayerNorm affine (zero-padded)
    # o_ref   : (1, H, W, Dp)
    _, Hp2, Wp2, Dp = xpad_ref.shape
    H, W = Hp2 - 2, Wp2 - 2

    # Hoist all parameter loads / broadcasts out of the tap loop.
    taps = dww_ref[...]                     # (9, Dp)
    dwb = dwb_ref[...].reshape(1, 1, Dp)
    gamma = g_ref[...].reshape(1, 1, Dp)
    beta = b_ref[...].reshape(1, 1, Dp)

    # Center read doubles as the gate input (dy=1, dx=1 tap) -> 9 reads total.
    x = xpad_ref[0, 1:1 + H, 1:1 + W, :]    # (H, W, Dp)
    acc = x * taps[4, :].reshape(1, 1, Dp)
    for k in range(9):
        if k == 4:
            continue
        dy, dx = k // 3, k % 3
        acc = acc + xpad_ref[0, dy:dy + H, dx:dx + W, :] * taps[k, :].reshape(1, 1, Dp)
    acc = acc + dwb

    gated = x * jax.nn.sigmoid(acc)         # padded lanes stay exactly 0

    # One-pass LayerNorm statistics over the true embed dim (padded lanes are
    # zero, so summing over Dp equals summing over d_true).
    s1 = jnp.sum(gated, axis=-1, keepdims=True)
    s2 = jnp.sum(gated * gated, axis=-1, keepdims=True)
    mean = s1 * (1.0 / d_true)
    var = s2 * (1.0 / d_true) - mean * mean
    inv = lax.rsqrt(jnp.maximum(var, 0.0) + EPS)
    y = (gated - mean) * inv
    o_ref[0] = y * gamma + beta             # padded lanes -> 0 (gamma/beta pad = 0)


# ------------------------------ wrappers -------------------------------------
def _proj_matmul(patches, w_flat, bias, tm):
    Mp, Kp = patches.shape
    Dp = w_flat.shape[1]
    grid_m = Mp // tm
    return pl.pallas_call(
        _proj_matmul_kernel,
        out_shape=jax.ShapeDtypeStruct((Mp, Dp), jnp.float32),
        grid=(grid_m,),
        in_specs=[
            pl.BlockSpec((tm, Kp), lambda i: (i, 0)),
            pl.BlockSpec((Kp, Dp), lambda i: (0, 0)),
            pl.BlockSpec((1, Dp), lambda i: (0, 0)),
        ],
        out_specs=pl.BlockSpec((tm, Dp), lambda i: (i, 0)),
        compiler_params=pltpu.CompilerParams(
            dimension_semantics=("parallel",),
            # Steady-state tiles are small (double-buffered TM x Kp bf16 +
            # TM x Dp f32); 32 MiB leaves ample headroom on all generations.
            vmem_limit_bytes=32 * 1024 * 1024,
        ),
    )(patches, w_flat, bias)


def _pos_layernorm(feat_pad, dw_taps, dw_bias, gamma, beta, d_true):
    B, Hp2, Wp2, Dp = feat_pad.shape
    H, W = Hp2 - 2, Wp2 - 2
    kern = functools.partial(_pos_layernorm_kernel, d_true=d_true)
    return pl.pallas_call(
        kern,
        out_shape=jax.ShapeDtypeStruct((B, H, W, Dp), jnp.float32),
        grid=(B,),
        in_specs=[
            pl.BlockSpec((1, Hp2, Wp2, Dp), lambda b: (b, 0, 0, 0)),
            pl.BlockSpec((9, Dp), lambda b: (0, 0)),
            pl.BlockSpec((1, Dp), lambda b: (0, 0)),
            pl.BlockSpec((1, Dp), lambda b: (0, 0)),
            pl.BlockSpec((1, Dp), lambda b: (0, 0)),
        ],
        out_specs=pl.BlockSpec((1, H, W, Dp), lambda b: (b, 0, 0, 0)),
        compiler_params=pltpu.CompilerParams(
            dimension_semantics=("parallel",),
            # One image per block (~10 MB padded at 224x224/768) double
            # buffered; stay well under v7x's 64 MiB physical VMEM.
            vmem_limit_bytes=48 * 1024 * 1024,
        ),
    )(feat_pad, dw_taps, dw_bias, gamma, beta)


@jax.jit
def patch_embed_forward(x, params):
    """x: (B, C, Hi, Wi) float32 NCHW.  Returns (B, Ho*Wo, D), plus Ho, Wo."""
    B, C, Hi, Wi = x.shape
    kh = kw = PATCH
    Ho = (Hi + 2 * PAD - kh) // STRIDE + 1
    Wo = (Wi + 2 * PAD - kw) // STRIDE + 1
    D = params["w_proj"].shape[0]
    K = C * kh * kw
    Kp = _round_up(K, 128)            # lane-dense A operand for the matmul
    Dp = _round_up(D, 128)            # lane-dense outputs / LN dim

    # --- im2col (glue, plain JAX) --------------------------------------------
    # TODO(synk): build patches per-tile inside the Pallas kernel (strided
    # reads of the padded NHWC input) instead of materializing this ~3x
    # expanded matrix in HBM.
    xp = jnp.pad(x, ((0, 0), (0, 0), (PAD, PAD), (PAD, PAD)))
    cols = []
    for i in range(kh):
        for j in range(kw):
            cols.append(xp[:, :, i:i + STRIDE * Ho:STRIDE, j:j + STRIDE * Wo:STRIDE])
    patches = jnp.stack(cols, axis=2)                     # (B, C, kh*kw, Ho, Wo)
    patches = patches.transpose(0, 3, 4, 1, 2).reshape(B * Ho * Wo, K)

    M = B * Ho * Wo
    TM = min(256, _round_up(M, 8))                        # M-tile (rows / grid step)
    Mp = _round_up(M, TM)

    # Zero-pad M->Mp, K->Kp and cast to bf16 (native MXU rate, half the DMA).
    patches = jnp.pad(patches, ((0, Mp - M), (0, Kp - K))).astype(jnp.bfloat16)
    w_flat = params["w_proj"].reshape(D, K).T             # (K, D), (C, kh, kw) order
    w_flat = jnp.pad(w_flat, ((0, Kp - K), (0, Dp - D))).astype(jnp.bfloat16)
    bias = jnp.pad(params["b_proj"], (0, Dp - D))[None, :]

    # --- strided-conv projection as a tiled MXU matmul (Pallas) ---------------
    feat = _proj_matmul(patches, w_flat, bias, TM)        # (Mp, Dp) f32
    feat = feat[:M].reshape(B, Ho, Wo, Dp)                # NHWC, lane-padded D

    # --- fused Positional (depthwise 3x3 + sigmoid gate) + LayerNorm (Pallas) -
    # TODO(synk): handle the 1-pixel halo inside the kernel (row-stripe tiling)
    # so this jnp.pad round trip of the activation disappears.
    feat_pad = jnp.pad(feat, ((0, 0), (1, 1), (1, 1), (0, 0)))
    dw_taps = jnp.pad(params["w_dw"].reshape(D, 9).T, ((0, 0), (0, Dp - D)))
    dw_bias = jnp.pad(params["b_dw"], (0, Dp - D))[None, :]
    gamma = jnp.pad(params["gamma"], (0, Dp - D))[None, :]
    beta = jnp.pad(params["beta"], (0, Dp - D))[None, :]

    out = _pos_layernorm(feat_pad, dw_taps, dw_bias, gamma, beta, D)
    # flatten(2).transpose(1, 2) on NCHW == row-major (H, W) flatten in NHWC
    out = out[..., :D].reshape(B, Ho * Wo, D)
    return out, Ho, Wo


# ---------------------------- pure-JAX reference -----------------------------
def reference_forward(x, params):
    dn = ("NCHW", "OIHW", "NCHW")
    D = params["w_proj"].shape[0]
    f = lax.conv_general_dilated(
        x, params["w_proj"], (STRIDE, STRIDE), [(PAD, PAD), (PAD, PAD)],
        dimension_numbers=dn, precision=lax.Precision.HIGHEST)
    f = f + params["b_proj"][None, :, None, None]
    g = lax.conv_general_dilated(
        f, params["w_dw"], (1, 1), [(1, 1), (1, 1)],
        dimension_numbers=dn, feature_group_count=D,
        precision=lax.Precision.HIGHEST)
    g = g + params["b_dw"][None, :, None, None]
    f = f * jax.nn.sigmoid(g)
    B, Dd, H, W = f.shape
    t = f.reshape(B, Dd, H * W).transpose(0, 2, 1)        # (B, HW, D)
    mean = t.mean(-1, keepdims=True)
    var = ((t - mean) ** 2).mean(-1, keepdims=True)
    y = (t - mean) / jnp.sqrt(var + EPS)
    return y * params["gamma"] + params["beta"], H, W


# --------------------------------- main --------------------------------------
if __name__ == "__main__":
    key = jax.random.PRNGKey(0)
    k1, k2, k3, k4, k5, k6, kx = jax.random.split(key, 7)

    params = {
        # nn.Conv2d(in_chans, embed_dim, kernel_size=7, stride=4, padding=3)
        "w_proj": 0.05 * jax.random.normal(k1, (EMBED, IN_CH, PATCH, PATCH), jnp.float32),
        "b_proj": 0.05 * jax.random.normal(k2, (EMBED,), jnp.float32),
        # Positional: nn.Conv2d(dim, dim, 3, padding=1, groups=dim)
        "w_dw": 0.05 * jax.random.normal(k3, (EMBED, 1, 3, 3), jnp.float32),
        "b_dw": 0.05 * jax.random.normal(k4, (EMBED,), jnp.float32),
        # nn.LayerNorm(embed_dim)
        "gamma": 1.0 + 0.1 * jax.random.normal(k5, (EMBED,), jnp.float32),
        "beta": 0.1 * jax.random.normal(k6, (EMBED,), jnp.float32),
    }

    x = jax.random.normal(kx, (2, IN_CH, IMG, IMG), jnp.float32)   # NCHW

    out, H, W = patch_embed_forward(x, params)
    out = jax.block_until_ready(out)

    ref, Hr, Wr = reference_forward(x, params)
    assert out.shape == (2, H * W, EMBED) and (H, W) == (Hr, Wr)
    # bf16 MXU operands (per perf review) vs. f32 HIGHEST reference: tolerance
    # relaxed slightly relative to pure-f32.
    assert jnp.allclose(out, ref, atol=2e-2, rtol=2e-2), "mismatch vs reference"

    print("KERNEL_OK")
</pallas_src>

<mosaic_0001>
module attributes {stable_mosaic.version = 11 : i64} {
  func.func @_proj_matmul_kernel(%arg0: i32, %arg1: memref<32x256xbf16, #tpu.memory_space<vmem>>, %arg2: memref<256x128xbf16, #tpu.memory_space<vmem>>, %arg3: memref<1x128xf32, #tpu.memory_space<vmem>>, %arg4: memref<32x128xf32, #tpu.memory_space<vmem>>) attributes {dimension_semantics = [#tpu.dimension_semantics<parallel>], iteration_bounds = array<i64: 1>, scalar_prefetch = 0 : i64, scratch_operands = 0 : i64, tpu.core_type = #tpu.core_type<tc>, window_params = [{transform_indices = @transform_0, window_bounds = array<i64: 32, 256>}, {pipeline_mode = #tpu.pipeline_mode<synchronous>, transform_indices = @transform_1, window_bounds = array<i64: 256, 128>}, {pipeline_mode = #tpu.pipeline_mode<synchronous>, transform_indices = @transform_2, window_bounds = array<i64: 1, 128>}, {transform_indices = @transform_3, window_bounds = array<i64: 32, 128>}]} {
    %c0 = arith.constant 0 : index
    %c0_0 = arith.constant 0 : index
    %0 = vector.load %arg1[%c0, %c0_0] : memref<32x256xbf16, #tpu.memory_space<vmem>>, vector<32x256xbf16>
    %c0_1 = arith.constant 0 : index
    %c0_2 = arith.constant 0 : index
    %1 = vector.load %arg2[%c0_1, %c0_2] : memref<256x128xbf16, #tpu.memory_space<vmem>>, vector<256x128xbf16>
    %cst = arith.constant dense<0.000000e+00> : vector<32x128xf32>
    %2 = tpu.matmul %0, %1, %cst {dimension_numbers = #tpu.dot_dimension_numbers<[1], [0], [0], [1], [0, 0, 1, 1], [], []>} : vector<32x256xbf16>, vector<256x128xbf16>, vector<32x128xf32> -> vector<32x128xf32>
    %c0_3 = arith.constant 0 : index
    %c0_4 = arith.constant 0 : index
    %3 = vector.load %arg3[%c0_3, %c0_4] : memref<1x128xf32, #tpu.memory_space<vmem>>, vector<1x128xf32>
    %4 = vector.broadcast %3 : vector<1x128xf32> to vector<32x128xf32>
    %5 = arith.addf %2, %4 : vector<32x128xf32>
    %c0_5 = arith.constant 0 : index
    %c0_6 = arith.constant 0 : index
    %6 = vector.load %arg4[%c0_5, %c0_6] : memref<32x128xf32, #tpu.memory_space<vmem>>, vector<32x128xf32>
    tpu.vector_store %arg4[%c0_5, %c0_6], %5 {strides = array<i32>} : memref<32x128xf32, #tpu.memory_space<vmem>>, vector<32x128xf32>,
    return
  }
  func.func @transform_0(%arg0: i32) -> (i32, i32) {
    %c0_i32 = arith.constant 0 : i32
    %c0_i32_0 = arith.constant 0 : i32
    return %arg0, %c0_i32 : i32, i32
  }
  func.func @transform_1(%arg0: i32) -> (i32, i32) {
    %c0_i32 = arith.constant 0 : i32
    %c0_i32_0 = arith.constant 0 : i32
    %c0_i32_1 = arith.constant 0 : i32
    return %c0_i32, %c0_i32_0 : i32, i32
  }
  func.func @transform_2(%arg0: i32) -> (i32, i32) {
    %c0_i32 = arith.constant 0 : i32
    %c0_i32_0 = arith.constant 0 : i32
    %c0_i32_1 = arith.constant 0 : i32
    return %c0_i32, %c0_i32_0 : i32, i32
  }
  func.func @transform_3(%arg0: i32) -> (i32, i32) {
    %c0_i32 = arith.constant 0 : i32
    %c0_i32_0 = arith.constant 0 : i32
    return %arg0, %c0_i32 : i32, i32
  }
}

module attributes {stable_mosaic.version = 11 : i64} {
  func.func @_pos_layernorm_kernel(%arg0: i32, %arg1: memref<1x6x6x128xf32, #tpu.memory_space<vmem>>, %arg2: memref<9x128xf32, #tpu.memory_space<vmem>>, %arg3: memref<1x128xf32, #tpu.memory_space<vmem>>, %arg4: memref<1x128xf32, #tpu.memory_space<vmem>>, %arg5: memref<1x128xf32, #tpu.memory_space<vmem>>, %arg6: memref<1x4x4x128xf32, #tpu.memory_space<vmem>>) attributes {dimension_semantics = [#tpu.dimension_semantics<parallel>], iteration_bounds = array<i64: 2>, scalar_prefetch = 0 : i64, scratch_operands = 0 : i64, tpu.core_type = #tpu.core_type<tc>, window_params = [{transform_indices = @transform_0, window_bounds = array<i64: 1, 6, 6, 128>}, {pipeline_mode = #tpu.pipeline_mode<synchronous>, transform_indices = @transform_1, window_bounds = array<i64: 9, 128>}, {pipeline_mode = #tpu.pipeline_mode<synchronous>, transform_indices = @transform_2, window_bounds = array<i64: 1, 128>}, {pipeline_mode = #tpu.pipeline_mode<synchronous>, transform_indices = @transform_3, window_bounds = array<i64: 1, 128>}, {pipeline_mode = #tpu.pipeline_mode<synchronous>, transform_indices = @transform_4, window_bounds = array<i64: 1, 128>}, {transform_indices = @transform_5, window_bounds = array<i64: 1, 4, 4, 128>}]} {
    %c0 = arith.constant 0 : index
    %c0_0 = arith.constant 0 : index
    %0 = vector.load %arg2[%c0, %c0_0] : memref<9x128xf32, #tpu.memory_space<vmem>>, vector<9x128xf32>
    %c0_1 = arith.constant 0 : index
    %c0_2 = arith.constant 0 : index
    %1 = vector.load %arg3[%c0_1, %c0_2] : memref<1x128xf32, #tpu.memory_space<vmem>>, vector<1x128xf32>
    %2 = vector.shape_cast %1 : vector<1x128xf32> to vector<1x1x128xf32>
    %c0_3 = arith.constant 0 : index
    %c0_4 = arith.constant 0 : index
    %3 = vector.load %arg4[%c0_3, %c0_4] : memref<1x128xf32, #tpu.memory_space<vmem>>, vector<1x128xf32>
    %4 = vector.shape_cast %3 : vector<1x128xf32> to vector<1x1x128xf32>
    %c0_5 = arith.constant 0 : index
    %c0_6 = arith.constant 0 : index
    %5 = vector.load %arg5[%c0_5, %c0_6] : memref<1x128xf32, #tpu.memory_space<vmem>>, vector<1x128xf32>
    %6 = vector.shape_cast %5 : vector<1x128xf32> to vector<1x1x128xf32>
    %c0_7 = arith.constant 0 : index
    %c1 = arith.constant 1 : index
    %c1_8 = arith.constant 1 : index
    %c0_9 = arith.constant 0 : index
    %7 = vector.load %arg1[%c0_7, %c1, %c1_8, %c0_9] : memref<1x6x6x128xf32, #tpu.memory_space<vmem>>, vector<1x4x4x128xf32>
    %8 = vector.shape_cast %7 : vector<1x4x4x128xf32> to vector<4x4x128xf32>
    %9 = vector.extract_strided_slice %0 {offsets = [4, 0], sizes = [1, 128], strides = [1, 1]} : vector<9x128xf32> to vector<1x128xf32>
    %10 = vector.shape_cast %9 : vector<1x128xf32> to vector<128xf32>
    %11 = vector.shape_cast %10 : vector<128xf32> to vector<1x1x128xf32>
    %12 = vector.broadcast %11 : vector<1x1x128xf32> to vector<4x4x128xf32>
    %13 = arith.mulf %8, %12 : vector<4x4x128xf32>
    %c0_10 = arith.constant 0 : index
    %c0_11 = arith.constant 0 : index
    %c0_12 = arith.constant 0 : index
    %c0_13 = arith.constant 0 : index
    %14 = vector.load %arg1[%c0_10, %c0_11, %c0_12, %c0_13] : memref<1x6x6x128xf32, #tpu.memory_space<vmem>>, vector<1x4x4x128xf32>
    %15 = vector.shape_cast %14 : vector<1x4x4x128xf32> to vector<4x4x128xf32>
    %16 = vector.extract_strided_slice %0 {offsets = [0, 0], sizes = [1, 128], strides = [1, 1]} : vector<9x128xf32> to vector<1x128xf32>
    %17 = vector.shape_cast %16 : vector<1x128xf32> to vector<128xf32>
    %18 = vector.shape_cast %17 : vector<128xf32> to vector<1x1x128xf32>
    %19 = vector.broadcast %18 : vector<1x1x128xf32> to vector<4x4x128xf32>
    %20 = arith.mulf %15, %19 : vector<4x4x128xf32>
    %21 = arith.addf %13, %20 : vector<4x4x128xf32>
    %c0_14 = arith.constant 0 : index
    %c0_15 = arith.constant 0 : index
    %c1_16 = arith.constant 1 : index
    %c0_17 = arith.constant 0 : index
    %22 = vector.load %arg1[%c0_14, %c0_15, %c1_16, %c0_17] : memref<1x6x6x128xf32, #tpu.memory_space<vmem>>, vector<1x4x4x128xf32>
    %23 = vector.shape_cast %22 : vector<1x4x4x128xf32> to vector<4x4x128xf32>
    %24 = vector.extract_strided_slice %0 {offsets = [1, 0], sizes = [1, 128], strides = [1, 1]} : vector<9x128xf32> to vector<1x128xf32>
    %25 = vector.shape_cast %24 : vector<1x128xf32> to vector<128xf32>
    %26 = vector.shape_cast %25 : vector<128xf32> to vector<1x1x128xf32>
    %27 = vector.broadcast %26 : vector<1x1x128xf32> to vector<4x4x128xf32>
    %28 = arith.mulf %23, %27 : vector<4x4x128xf32>
    %29 = arith.addf %21, %28 : vector<4x4x128xf32>
    %c0_18 = arith.constant 0 : index
    %c0_19 = arith.constant 0 : index
    %c2 = arith.constant 2 : index
    %c0_20 = arith.constant 0 : index
    %30 = vector.load %arg1[%c0_18, %c0_19, %c2, %c0_20] : memref<1x6x6x128xf32, #tpu.memory_space<vmem>>, vector<1x4x4x128xf32>
    %31 = vector.shape_cast %30 : vector<1x4x4x128xf32> to vector<4x4x128xf32>
    %32 = vector.extract_strided_slice %0 {offsets = [2, 0], sizes = [1, 128], strides = [1, 1]} : vector<9x128xf32> to vector<1x128xf32>
    %33 = vector.shape_cast %32 : vector<1x128xf32> to vector<128xf32>
    %34 = vector.shape_cast %33 : vector<128xf32> to vector<1x1x128xf32>
    %35 = vector.broadcast %34 : vector<1x1x128xf32> to vector<4x4x128xf32>
    %36 = arith.mulf %31, %35 : vector<4x4x128xf32>
    %37 = arith.addf %29, %36 : vector<4x4x128xf32>
    %c0_21 = arith.constant 0 : index
    %c1_22 = arith.constant 1 : index
    %c0_23 = arith.constant 0 : index
    %c0_24 = arith.constant 0 : index
    %38 = vector.load %arg1[%c0_21, %c1_22, %c0_23, %c0_24] : memref<1x6x6x128xf32, #tpu.memory_space<vmem>>, vector<1x4x4x128xf32>
    %39 = vector.shape_cast %38 : vector<1x4x4x128xf32> to vector<4x4x128xf32>
    %40 = vector.extract_strided_slice %0 {offsets = [3, 0], sizes = [1, 128], strides = [1, 1]} : vector<9x128xf32> to vector<1x128xf32>
    %41 = vector.shape_cast %40 : vector<1x128xf32> to vector<128xf32>
    %42 = vector.shape_cast %41 : vector<128xf32> to vector<1x1x128xf32>
    %43 = vector.broadcast %42 : vector<1x1x128xf32> to vector<4x4x128xf32>
    %44 = arith.mulf %39, %43 : vector<4x4x128xf32>
    %45 = arith.addf %37, %44 : vector<4x4x128xf32>
    %c0_25 = arith.constant 0 : index
    %c1_26 = arith.constant 1 : index
    %c2_27 = arith.constant 2 : index
    %c0_28 = arith.constant 0 : index
    %46 = vector.load %arg1[%c0_25, %c1_26, %c2_27, %c0_28] : memref<1x6x6x128xf32, #tpu.memory_space<vmem>>, vector<1x4x4x128xf32>
    %47 = vector.shape_cast %46 : vector<1x4x4x128xf32> to vector<4x4x128xf32>
    %48 = vector.extract_strided_slice %0 {offsets = [5, 0], sizes = [1, 128], strides = [1, 1]} : vector<9x128xf32> to vector<1x128xf32>
    %49 = vector.shape_cast %48 : vector<1x128xf32> to vector<128xf32>
    %50 = vector.shape_cast %49 : vector<128xf32> to vector<1x1x128xf32>
    %51 = vector.broadcast %50 : vector<1x1x128xf32> to vector<4x4x128xf32>
    %52 = arith.mulf %47, %51 : vector<4x4x128xf32>
    %53 = arith.addf %45, %52 : vector<4x4x128xf32>
    %c0_29 = arith.constant 0 : index
    %c2_30 = arith.constant 2 : index
    %c0_31 = arith.constant 0 : index
    %c0_32 = arith.constant 0 : index
    %54 = vector.load %arg1[%c0_29, %c2_30, %c0_31, %c0_32] : memref<1x6x6x128xf32, #tpu.memory_space<vmem>>, vector<1x4x4x128xf32>
    %55 = vector.shape_cast %54 : vector<1x4x4x128xf32> to vector<4x4x128xf32>
    %56 = vector.extract_strided_slice %0 {offsets = [6, 0], sizes = [1, 128], strides = [1, 1]} : vector<9x128xf32> to vector<1x128xf32>
    %57 = vector.shape_cast %56 : vector<1x128xf32> to vector<128xf32>
    %58 = vector.shape_cast %57 : vector<128xf32> to vector<1x1x128xf32>
    %59 = vector.broadcast %58 : vector<1x1x128xf32> to vector<4x4x128xf32>
    %60 = arith.mulf %55, %59 : vector<4x4x128xf32>
    %61 = arith.addf %53, %60 : vector<4x4x128xf32>
    %c0_33 = arith.constant 0 : index
    %c2_34 = arith.constant 2 : index
    %c1_35 = arith.constant 1 : index
    %c0_36 = arith.constant 0 : index
    %62 = vector.load %arg1[%c0_33, %c2_34, %c1_35, %c0_36] : memref<1x6x6x128xf32, #tpu.memory_space<vmem>>, vector<1x4x4x128xf32>
    %63 = vector.shape_cast %62 : vector<1x4x4x128xf32> to vector<4x4x128xf32>
    %64 = vector.extract_strided_slice %0 {offsets = [7, 0], sizes = [1, 128], strides = [1, 1]} : vector<9x128xf32> to vector<1x128xf32>
    %65 = vector.shape_cast %64 : vector<1x128xf32> to vector<128xf32>
    %66 = vector.shape_cast %65 : vector<128xf32> to vector<1x1x128xf32>
    %67 = vector.broadcast %66 : vector<1x1x128xf32> to vector<4x4x128xf32>
    %68 = arith.mulf %63, %67 : vector<4x4x128xf32>
    %69 = arith.addf %61, %68 : vector<4x4x128xf32>
    %c0_37 = arith.constant 0 : index
    %c2_38 = arith.constant 2 : index
    %c2_39 = arith.constant 2 : index
    %c0_40 = arith.constant 0 : index
    %70 = vector.load %arg1[%c0_37, %c2_38, %c2_39, %c0_40] : memref<1x6x6x128xf32, #tpu.memory_space<vmem>>, vector<1x4x4x128xf32>
    %71 = vector.shape_cast %70 : vector<1x4x4x128xf32> to vector<4x4x128xf32>
    %72 = vector.extract_strided_slice %0 {offsets = [8, 0], sizes = [1, 128], strides = [1, 1]} : vector<9x128xf32> to vector<1x128xf32>
    %73 = vector.shape_cast %72 : vector<1x128xf32> to vector<128xf32>
    %74 = vector.shape_cast %73 : vector<128xf32> to vector<1x1x128xf32>
    %75 = vector.broadcast %74 : vector<1x1x128xf32> to vector<4x4x128xf32>
    %76 = arith.mulf %71, %75 : vector<4x4x128xf32>
    %77 = arith.addf %69, %76 : vector<4x4x128xf32>
    %78 = vector.broadcast %2 : vector<1x1x128xf32> to vector<4x4x128xf32>
    %79 = arith.addf %77, %78 : vector<4x4x128xf32>
    %80 = arith.negf %79 : vector<4x4x128xf32>
    %81 = math.exp %80 : vector<4x4x128xf32>
    %cst = arith.constant 1.000000e+00 : f32
    %82 = vector.broadcast %cst : f32 to vector<4x4x128xf32>
    %83 = arith.addf %82, %81 : vector<4x4x128xf32>
    %84 = arith.divf %82, %83 : vector<4x4x128xf32>
    %85 = arith.mulf %8, %84 : vector<4x4x128xf32>
    %cst_41 = arith.constant dense<0.000000e+00> : vector<4x4xf32>
    %86 = vector.multi_reduction <add>, %85, %cst_41 [2] : vector<4x4x128xf32> to vector<4x4xf32>
    %87 = vector.shape_cast %86 : vector<4x4xf32> to vector<4x4x1xf32>
    %88 = arith.mulf %85, %85 : vector<4x4x128xf32>
    %cst_42 = arith.constant dense<0.000000e+00> : vector<4x4xf32>
    %89 = vector.multi_reduction <add>, %88, %cst_42 [2] : vector<4x4x128xf32> to vector<4x4xf32>
    %90 = vector.shape_cast %89 : vector<4x4xf32> to vector<4x4x1xf32>
    %cst_43 = arith.constant 3.125000e-02 : f32
    %91 = vector.broadcast %cst_43 : f32 to vector<4x4x1xf32>
    %92 = arith.mulf %87, %91 : vector<4x4x1xf32>
    %cst_44 = arith.constant 3.125000e-02 : f32
    %93 = vector.broadcast %cst_44 : f32 to vector<4x4x1xf32>
    %94 = arith.mulf %90, %93 : vector<4x4x1xf32>
    %95 = arith.mulf %92, %92 : vector<4x4x1xf32>
    %96 = arith.subf %94, %95 : vector<4x4x1xf32>
    %cst_45 = arith.constant 0.000000e+00 : f32
    %97 = vector.broadcast %cst_45 : f32 to vector<4x4x1xf32>
    %98 = arith.maximumf %96, %97 : vector<4x4x1xf32>
    %cst_46 = arith.constant 9.99999974E-6 : f32
    %99 = vector.broadcast %cst_46 : f32 to vector<4x4x1xf32>
    %100 = arith.addf %98, %99 : vector<4x4x1xf32>
    %101 = math.rsqrt %100 : vector<4x4x1xf32>
    %102 = vector.broadcast %92 : vector<4x4x1xf32> to vector<4x4x128xf32>
    %103 = arith.subf %85, %102 : vector<4x4x128xf32>
    %104 = vector.broadcast %101 : vector<4x4x1xf32> to vector<4x4x128xf32>
    %105 = arith.mulf %103, %104 : vector<4x4x128xf32>
    %106 = vector.broadcast %4 : vector<1x1x128xf32> to vector<4x4x128xf32>
    %107 = arith.mulf %105, %106 : vector<4x4x128xf32>
    %108 = vector.broadcast %6 : vector<1x1x128xf32> to vector<4x4x128xf32>
    %109 = arith.addf %107, %108 : vector<4x4x128xf32>
    %c0_47 = arith.constant 0 : index
    %c0_48 = arith.constant 0 : index
    %c0_49 = arith.constant 0 : index
    %c0_50 = arith.constant 0 : index
    %110 = vector.load %arg6[%c0_47, %c0_48, %c0_49, %c0_50] : memref<1x4x4x128xf32, #tpu.memory_space<vmem>>, vector<1x4x4x128xf32>
    %111 = vector.shape_cast %110 : vector<1x4x4x128xf32> to vector<4x4x128xf32>
    %112 = vector.shape_cast %109 : vector<4x4x128xf32> to vector<1x4x4x128xf32>
    tpu.vector_store %arg6[%c0_47, %c0_48, %c0_49, %c0_50], %112 {strides = array<i32>} : memref<1x4x4x128xf32, #tpu.memory_space<vmem>>, vector<1x4x4x128xf32>,
    return
  }
  func.func @transform_0(%arg0: i32) -> (i32, i32, i32, i32) {
    %c0_i32 = arith.constant 0 : i32
    %c0_i32_0 = arith.constant 0 : i32
    %c0_i32_1 = arith.constant 0 : i32
    %c0_i32_2 = arith.constant 0 : i32
    return %arg0, %c0_i32, %c0_i32_0, %c0_i32_1 : i32, i32, i32, i32
  }
  func.func @transform_1(%arg0: i32) -> (i32, i32) {
    %c0_i32 = arith.constant 0 : i32
    %c0_i32_0 = arith.constant 0 : i32
    %c0_i32_1 = arith.constant 0 : i32
    return %c0_i32, %c0_i32_0 : i32, i32
  }
  func.func @transform_2(%arg0: i32) -> (i32, i32) {
    %c0_i32 = arith.constant 0 : i32
    %c0_i32_0 = arith.constant 0 : i32
    %c0_i32_1 = arith.constant 0 : i32
    return %c0_i32, %c0_i32_0 : i32, i32
  }
  func.func @transform_3(%arg0: i32) -> (i32, i32) {
    %c0_i32 = arith.constant 0 : i32
    %c0_i32_0 = arith.constant 0 : i32
    %c0_i32_1 = arith.constant 0 : i32
    return %c0_i32, %c0_i32_0 : i32, i32
  }
  func.func @transform_4(%arg0: i32) -> (i32, i32) {
    %c0_i32 = arith.constant 0 : i32
    %c0_i32_0 = arith.constant 0 : i32
    %c0_i32_1 = arith.constant 0 : i32
    return %c0_i32, %c0_i32_0 : i32, i32
  }
  func.func @transform_5(%arg0: i32) -> (i32, i32, i32, i32) {
    %c0_i32 = arith.constant 0 : i32
    %c0_i32_0 = arith.constant 0 : i32
    %c0_i32_1 = arith.constant 0 : i32
    %c0_i32_2 = arith.constant 0 : i32
    return %arg0, %c0_i32, %c0_i32_0, %c0_i32_1 : i32, i32, i32, i32
  }
}

</mosaic_0001>

<llo_original>
// kernel: patch_embed_forward.2
$region0: #{patch_embed_forward.2}
  #allocation0 [shape = 'u32[]', space=smem, size = 0x4, offset = 0x4, fixed_abs, tag = 'smem constant byte address 0x4 - core index']
  #allocation1 [shape = 'u32[144,128]{1,0:T(1,128)}', space=vmem, size = 0x12000, scoped, tag = 'internal scratch']
  %s0 = inlined_call_operand.vmem [shape: bf16[32,256], index: 0, kind: input, shape index: {}]
  %s1 = inlined_call_operand.vmem [shape: bf16[256,128], index: 1, kind: input, shape index: {}]
  %s2 = inlined_call_operand.vmem [shape: f32[1,128], index: 2, kind: input, shape index: {}]
  %s3 = inlined_call_operand.vmem [shape: f32[32,128], index: 3, kind: output, shape index: {}]
  %s4 = sld [smem:[#allocation0]]
  $region22: #{patch_embed_forward.2} parent=0
    _
  %s6 = ssub.s32 1, %s4
  %s7 = scalar_select 0, %s6, %s4
  // Predicated region
  $region2: #{patch_embed_forward.2} parent=0 // pred_check
    _
  $region3: #{patch_embed_forward.2} parent=0 // pred_check_branch
    %9 = sbr.rel (0) target = $region5
  $region4: #{patch_embed_forward.2} parent=0 // pred_region
    _
  $region5: #{patch_embed_forward.2} parent=0 // pred_fallthru
    _
  // Predicated region
  $region6: #{patch_embed_forward.2} parent=0 // pred_check
    _
  $region7: #{patch_embed_forward.2} parent=0 // pred_check_branch
    %11 = sbr.rel (0) target = $region9
  $region8: #{patch_embed_forward.2} parent=0 // pred_region
    _
  $region9: #{patch_embed_forward.2} parent=0 // pred_fallthru
    _
  // Predicated region
  $region10: #{patch_embed_forward.2} parent=0 // pred_check
    _
  $region11: #{patch_embed_forward.2} parent=0 // pred_check_branch
    %13 = sbr.rel (0) target = $region13
  $region12: #{patch_embed_forward.2} parent=0 // pred_region
    _
  $region13: #{patch_embed_forward.2} parent=0 // pred_fallthru
    _
  %v15 = vld [vmem:[%s0] sm:$0xff]
  %v16 = vld [vmem:[%s0 + $0x8] sm:$0xff]
  %v17 = vld [vmem:[%s0 + $0x10] sm:$0xff]
  %v18 = vld [vmem:[%s0 + $0x18] sm:$0xff]
  %v19 = vld [vmem:[%s1] sm:$0xf]
  %v20 = vld [vmem:[%s1 + $0x4] sm:$0xf]
  %v21 = vld [vmem:[%s1 + $0x8] sm:$0xf]
  %v22 = vld [vmem:[%s1 + $0xc] sm:$0xf]
  %v23 = vld [vmem:[%s1 + $0x10] sm:$0xf]
  %v24 = vld [vmem:[%s1 + $0x14] sm:$0xf]
  %v25 = vld [vmem:[%s1 + $0x18] sm:$0xf]
  %v26 = vld [vmem:[%s1 + $0x1c] sm:$0xf]
  %v27 = vld [vmem:[%s1 + $0x20] sm:$0xf]
  %v28 = vld [vmem:[%s1 + $0x24] sm:$0xf]
  %v29 = vld [vmem:[%s1 + $0x28] sm:$0xf]
  %v30 = vld [vmem:[%s1 + $0x2c] sm:$0xf]
  %v31 = vld [vmem:[%s1 + $0x30] sm:$0xf]
  %v32 = vld [vmem:[%s1 + $0x34] sm:$0xf]
  %v33 = vld [vmem:[%s1 + $0x38] sm:$0xf]
  %v34 = vld [vmem:[%s1 + $0x3c] sm:$0xf]
  %v35 = vld [vmem:[%s1 + $0x40] sm:$0xf]
  %v36 = vld [vmem:[%s1 + $0x44] sm:$0xf]
  %v37 = vld [vmem:[%s1 + $0x48] sm:$0xf]
  %v38 = vld [vmem:[%s1 + $0x4c] sm:$0xf]
  %v39 = vld [vmem:[%s1 + $0x50] sm:$0xf]
  %v40 = vld [vmem:[%s1 + $0x54] sm:$0xf]
  %v41 = vld [vmem:[%s1 + $0x58] sm:$0xf]
  %v42 = vld [vmem:[%s1 + $0x5c] sm:$0xf]
  %v43 = vld [vmem:[%s1 + $0x60] sm:$0xf]
  %v44 = vld [vmem:[%s1 + $0x64] sm:$0xf]
  %v45 = vld [vmem:[%s1 + $0x68] sm:$0xf]
  %v46 = vld [vmem:[%s1 + $0x6c] sm:$0xf]
  %v47 = vld [vmem:[%s1 + $0x70] sm:$0xf]
  %v48 = vld [vmem:[%s1 + $0x74] sm:$0xf]
  %v49 = vld [vmem:[%s1 + $0x78] sm:$0xf]
  %v50 = vld [vmem:[%s1 + $0x7c] sm:$0xf]
  %v51 = vld [vmem:[%s2] sm:$0x1]
  %v53 = vlaneseq
  %v54 = vshrl.u32 %v53, 7
  %v55 = vsub.s32 0, %v54
  %v56 = vrot.slane %v51, %v55
  %v62 = vunpack.c.l.b16 %v15
  %v63 = vunpack.c.h.b16 %v15
  %v64 = vunpack.c.l.b16 %v16
  %v65 = vunpack.c.h.b16 %v16
  %v66 = vunpack.c.l.b16 %v17
  %v67 = vunpack.c.h.b16 %v17
  %v68 = vunpack.c.l.b16 %v18
  %v69 = vunpack.c.h.b16 %v18
  %v70 = vpack.c.b16 %v64, %v62
  %v71 = vpack.c.b16 %v65, %v63
  %v72 = vpack.c.b16 %v68, %v66
  %v73 = vpack.c.b16 %v69, %v67
  %v110 = vunpack.c.l.b16 %v19
  %v111 = vunpack.c.l.b16 %v20
  %v112 = vunpack.c.l.b16 %v21
  %v113 = vunpack.c.l.b16 %v22
  %v114 = vunpack.c.l.b16 %v23
  %v115 = vunpack.c.l.b16 %v24
  %v116 = vunpack.c.l.b16 %v25
  %v117 = vunpack.c.l.b16 %v26
  %v118 = vunpack.c.l.b16 %v27
  %v119 = vunpack.c.l.b16 %v28
  %v120 = vunpack.c.l.b16 %v29
  %v121 = vunpack.c.l.b16 %v30
  %v122 = vunpack.c.l.b16 %v31
  %v123 = vunpack.c.l.b16 %v32
  %v124 = vunpack.c.l.b16 %v33
  %v125 = vunpack.c.l.b16 %v34
  %v126 = vunpack.c.l.b16 %v35
  %v127 = vunpack.c.l.b16 %v36
  %v128 = vunpack.c.l.b16 %v37
  %v129 = vunpack.c.l.b16 %v38
  %v130 = vunpack.c.l.b16 %v39
  %v131 = vunpack.c.l.b16 %v40
  %v132 = vunpack.c.l.b16 %v41
  %v133 = vunpack.c.l.b16 %v42
  %v134 = vunpack.c.l.b16 %v43
  %v135 = vunpack.c.l.b16 %v44
  %v136 = vunpack.c.l.b16 %v45
  %v137 = vunpack.c.l.b16 %v46
  %v138 = vunpack.c.l.b16 %v47
  %v139 = vunpack.c.l.b16 %v48
  %v140 = vunpack.c.l.b16 %v49
  %v141 = vunpack.c.l.b16 %v50
  %v142 = vpack.c.b16 %v111, %v110
  %v143 = vpack.c.b16 %v113, %v112
  %v144 = vpack.c.b16 %v115, %v114
  %v145 = vpack.c.b16 %v117, %v116
  %v146 = vpack.c.b16 %v119, %v118
  %v147 = vpack.c.b16 %v121, %v120
  %v148 = vpack.c.b16 %v123, %v122
  %v149 = vpack.c.b16 %v125, %v124
  %v150 = vpack.c.b16 %v127, %v126
  %v151 = vpack.c.b16 %v129, %v128
  %v152 = vpack.c.b16 %v131, %v130
  %v153 = vpack.c.b16 %v133, %v132
  %v154 = vpack.c.b16 %v135, %v134
  %v155 = vpack.c.b16 %v137, %v136
  %v156 = vpack.c.b16 %v139, %v138
  %v157 = vpack.c.b16 %v141, %v140
  %174 = vmatprep.subr.bf16.mxu0 0
  %175 = vmatpush1.bf16.msra.mxu0 %v142
  %176 = vmatprep.subr.bf16.mxu0 0
  %177 = vmatpush1.bf16.msra.mxu0 %v143
  %178 = vmatprep.subr.bf16.mxu0 0
  %179 = vmatpush1.bf16.msra.mxu0 %v144
  %180 = vmatprep.subr.bf16.mxu0 0
  %181 = vmatpush1.bf16.msra.mxu0 %v145
  %182 = vmatprep.subr.bf16.mxu0 0
  %183 = vmatpush1.bf16.msra.mxu0 %v146
  %184 = vmatprep.subr.bf16.mxu0 0
  %185 = vmatpush1.bf16.msra.mxu0 %v147
  %186 = vmatprep.subr.bf16.mxu0 0
  %187 = vmatpush1.bf16.msra.mxu0 %v148
  %188 = vmatprep.subr.bf16.mxu0 0
  %189 = vmatpush1.bf16.msra.mxu0 %v149
  %190 = vmatprep.subr.bf16.mxu0 0
  %191 = vmatpush1.bf16.msra.mxu0 %v150
  %192 = vmatprep.subr.bf16.mxu0 0
  %193 = vmatpush1.bf16.msra.mxu0 %v151
  %194 = vmatprep.subr.bf16.mxu0 0
  %195 = vmatpush1.bf16.msra.mxu0 %v152
  %196 = vmatprep.subr.bf16.mxu0 0
  %197 = vmatpush1.bf16.msra.mxu0 %v153
  %198 = vmatprep.subr.bf16.mxu0 0
  %199 = vmatpush1.bf16.msra.mxu0 %v154
  %200 = vmatprep.subr.bf16.mxu0 0
  %201 = vmatpush1.bf16.msra.mxu0 %v155
  %202 = vmatprep.subr.bf16.mxu0 0
  %203 = vmatpush1.bf16.msra.mxu0 %v156
  %204 = vmatprep.subr.bf16.mxu0 0
  %205 = vmatpush1.bf16.msra.mxu0 %v157
  %206 = vmatprep.mubr.bf16.mxu0 %v71
  %207 = vmatmul.mubr.bf16.gmra.mrb[0].mxu0 %v70
  %v208 = vpop.f32.mrb[0].mxu0
  %v209 = vadd.f32 %v56, %v208
  %v210 = vpop.f32.mrb[0].mxu0
  %v211 = vpop.f32.mrb[0].mxu0
  %v212 = vadd.f32 %v56, %v211
  %v213 = vpop.f32.mrb[0].mxu0
  %214 = vmatprep.mubr.bf16.mxu0 %v73
  %215 = vmatmul.mubr.bf16.gmra.mrb[0].mxu0 %v72
  %v216 = vpop.f32.mrb[0].mxu0
  %v217 = vadd.f32 %v56, %v216
  %v218 = vpop.f32.mrb[0].mxu0
  %v219 = vpop.f32.mrb[0].mxu0
  %v220 = vadd.f32 %v56, %v219
  %v221 = vpop.f32.mrb[0].mxu0
  %222 = vdwg.mxu0
  %223 = vst [vmem:[%s3] sm:$0xff] %v209
  %224 = vst [vmem:[%s3 + $0x8] sm:$0xff] %v212
  %225 = vst [vmem:[%s3 + $0x10] sm:$0xff] %v217
  %226 = vst [vmem:[%s3 + $0x18] sm:$0xff] %v220
  // Predicated region
  $region14: #{patch_embed_forward.2} parent=0 // pred_check
    _
  $region15: #{patch_embed_forward.2} parent=0 // pred_check_branch
    %228 = sbr.rel (0) target = $region17
  $region16: #{patch_embed_forward.2} parent=0 // pred_region
    _
  $region17: #{patch_embed_forward.2} parent=0 // pred_fallthru
    _
  // Predicated region
  $region18: #{patch_embed_forward.2} parent=0 // pred_check
    _
  $region19: #{patch_embed_forward.2} parent=0 // pred_check_branch
    %230 = sbr.rel (0) target = $region21
  $region20: #{patch_embed_forward.2} parent=0 // pred_region
    _
  $region21: #{patch_embed_forward.2} parent=0 // pred_fallthru
    _

// kernel: patch_embed_forward.3
$region0: #{patch_embed_forward.3}
  #allocation0 [shape = 'u32[]', space=smem, size = 0x4, offset = 0x4, fixed_abs, tag = 'smem constant byte address 0x4 - core index']
  #allocation1 [shape = 'u32[144,128]{1,0:T(1,128)}', space=vmem, size = 0x12000, scoped, tag = 'internal scratch']
  %s0 = inlined_call_operand.vmem [shape: f32[2,6,6,128], index: 0, kind: input, shape index: {}]
  %s1 = inlined_call_operand.vmem [shape: f32[9,128], index: 1, kind: input, shape index: {}]
  %s2 = inlined_call_operand.vmem [shape: f32[1,128], index: 2, kind: input, shape index: {}]
  %s3 = inlined_call_operand.vmem [shape: f32[1,128], index: 3, kind: input, shape index: {}]
  %s4 = inlined_call_operand.vmem [shape: f32[1,128], index: 4, kind: input, shape index: {}]
  %s5 = inlined_call_operand.hbm [shape: f32[2,4,4,128], index: 5, kind: output, shape index: {}]
  %s6 = sld [smem:[#allocation0]]
  $region53: #{patch_embed_forward.3} parent=0
    _
  %s8 = ssub.s32 1, %s6
  %s9 = scalar_select 0, %s8, %s6
  $region1: #{patch_embed_forward.3} parent=0
    #allocation2 [shape = 'u8[16384]{0}', space=vmem, size = 0x4000, scoped, tag = 'output window, operand 0']
    #allocation3 [shape = 's32[2]{0}', space=sflag, size = 0x8, scoped, tag = 'scoped memory for patch_embed_forward.3']
    %10 = vsyncpa [#allocation3], 0
    %s11 = scalar_lea.sflag [#allocation3], 1
    %12 = vsyncpa %s11, 0
    loop: start=0, step=1, limit=4
    $region2: #{patch_embed_forward.3} parent=1 // loop_pre_header
      _
    $region3: #{patch_embed_forward.3} parent=1 // loop_header
      %s14 = sphi 0, %s18
      %p15 = scmp.ge.s32.totalorder %s14, 4
      %s24 = sphi 0, %s26
      %s27 = sphi 0, %s24
      %s28 = sphi 0, %s27
      %s44 = sphi 0, %s28
      %s48 = sphi 0, %s48
      %s50 = sphi 0, %s48
      %s51 = sphi 0, %s50
      %s65 = sphi 0, %s51
      %s69 = sphi 0, %s69
      %s71 = sphi 0, %s69
      %s72 = sphi 0, %s71
      %s86 = sphi 0, %s72
      %s90 = sphi 0, %s90
      %s92 = sphi 0, %s90
      %s93 = sphi 0, %s92
      %s107 = sphi 0, %s93
      %s111 = sphi 0, %s111
      %s113 = sphi 0, %s111
      %s114 = sphi 0, %s113
      %s128 = sphi 0, %s114
      %s134 = sphi 0, %s136
      %s137 = sphi 0, %s134
      %s138 = sphi 0, %s137
      %s154 = sphi 0, %s138
    $region4: #{patch_embed_forward.3} parent=1 // loop_header_branch
      %17 = sbr.rel (%p15) target = $region8
    $region5: #{patch_embed_forward.3} parent=1 // loop_body
      %s19 = ssub.s32 %s14, 1
      %s20 = ssub.s32 %s14, 2
      %s21 = sadd.s32 %s14, 1
      %s22 = ssub.s32 %s14, %s21
      %p23 = scmp.eq.s32.totalorder %s22, 0
      %s25 = sadd.s32 %s24, 1
      %s26 = scalar_select %p23, %s24, %s25
      %p29 = pneg %p23
      %p30 = scmp.eq.s32.totalorder %s14, 1
      %p31 = por %p29, %p30
      %p32 = scmp.ne.s32.totalorder %s24, %s27
      %p33 = scmp.eq.s32.totalorder %s14, 0
      %p34 = por %p32, %p33
      %p35 = scmp.ne.s32.totalorder %s24, %s27
      %p36 = scmp.eq.s32.totalorder %s19, 1
      %p37 = por %p35, %p36
      %p38 = scmp.ne.s32.totalorder %s27, %s28
      %p39 = scmp.eq.s32.totalorder %s19, 0
      %p40 = por %p38, %p39
      %p41 = scmp.ne.s32.totalorder %s27, %s28
      %p42 = scmp.eq.s32.totalorder %s20, 1
      %p43 = por %p41, %p42
      %p45 = scmp.ne.s32.totalorder %s28, %s44
      %p46 = scmp.eq.s32.totalorder %s20, 0
      %p47 = por %p45, %p46
      %s49 = sadd.s32 %s48, 1
      %p52 = scmp.eq.s32.totalorder %s14, 1
      %p53 = scmp.ne.s32.totalorder %s48, %s50
      %p54 = scmp.eq.s32.totalorder %s14, 0
      %p55 = por %p53, %p54
      %p56 = scmp.ne.s32.totalorder %s48, %s50
      %p57 = scmp.eq.s32.totalorder %s19, 1
      %p58 = por %p56, %p57
      %p59 = scmp.ne.s32.totalorder %s50, %s51
      %p60 = scmp.eq.s32.totalorder %s19, 0
      %p61 = por %p59, %p60
      %p62 = scmp.ne.s32.totalorder %s50, %s51
      %p63 = scmp.eq.s32.totalorder %s20, 1
      %p64 = por %p62, %p63
      %p66 = scmp.ne.s32.totalorder %s51, %s65
      %p67 = scmp.eq.s32.totalorder %s20, 0
      %p68 = por %p66, %p67
      %s70 = sadd.s32 %s69, 1
      %p73 = scmp.eq.s32.totalorder %s14, 1
      %p74 = scmp.ne.s32.totalorder %s69, %s71
      %p75 = scmp.eq.s32.totalorder %s14, 0
      %p76 = por %p74, %p75
      %p77 = scmp.ne.s32.totalorder %s69, %s71
      %p78 = scmp.eq.s32.totalorder %s19, 1
      %p79 = por %p77, %p78
      %p80 = scmp.ne.s32.totalorder %s71, %s72
      %p81 = scmp.eq.s32.totalorder %s19, 0
      %p82 = por %p80, %p81
      %p83 = scmp.ne.s32.totalorder %s71, %s72
      %p84 = scmp.eq.s32.totalorder %s20, 1
      %p85 = por %p83, %p84
      %p87 = scmp.ne.s32.totalorder %s72, %s86
      %p88 = scmp.eq.s32.totalorder %s20, 0
      %p89 = por %p87, %p88
      %s91 = sadd.s32 %s90, 1
      %p94 = scmp.eq.s32.totalorder %s14, 1
      %p95 = scmp.ne.s32.totalorder %s90, %s92
      %p96 = scmp.eq.s32.totalorder %s14, 0
      %p97 = por %p95, %p96
      %p98 = scmp.ne.s32.totalorder %s90, %s92
      %p99 = scmp.eq.s32.totalorder %s19, 1
      %p100 = por %p98, %p99
      %p101 = scmp.ne.s32.totalorder %s92, %s93
      %p102 = scmp.eq.s32.totalorder %s19, 0
      %p103 = por %p101, %p102
      %p104 = scmp.ne.s32.totalorder %s92, %s93
      %p105 = scmp.eq.s32.totalorder %s20, 1
      %p106 = por %p104, %p105
      %p108 = scmp.ne.s32.totalorder %s93, %s107
      %p109 = scmp.eq.s32.totalorder %s20, 0
      %p110 = por %p108, %p109
      %s112 = sadd.s32 %s111, 1
      %p115 = scmp.eq.s32.totalorder %s14, 1
      %p116 = scmp.ne.s32.totalorder %s111, %s113
      %p117 = scmp.eq.s32.totalorder %s14, 0
      %p118 = por %p116, %p117
      %p119 = scmp.ne.s32.totalorder %s111, %s113
      %p120 = scmp.eq.s32.totalorder %s19, 1
      %p121 = por %p119, %p120
      %p122 = scmp.ne.s32.totalorder %s113, %s114
      %p123 = scmp.eq.s32.totalorder %s19, 0
      %p124 = por %p122, %p123
      %p125 = scmp.ne.s32.totalorder %s113, %s114
      %p126 = scmp.eq.s32.totalorder %s20, 1
      %p127 = por %p125, %p126
      %p129 = scmp.ne.s32.totalorder %s114, %s128
      %p130 = scmp.eq.s32.totalorder %s20, 0
      %p131 = por %p129, %p130
      %s132 = ssub.s32 %s14, %s21
      %p133 = scmp.eq.s32.totalorder %s132, 0
      %s135 = sadd.s32 %s134, 1
      %s136 = scalar_select %p133, %s134, %s135
      %p139 = pneg %p133
      %p140 = scmp.eq.s32.totalorder %s14, 1
      %p141 = por %p139, %p140
      %p142 = scmp.ne.s32.totalorder %s134, %s137
      %p143 = scmp.eq.s32.totalorder %s14, 0
      %p144 = por %p142, %p143
      %p145 = scmp.ne.s32.totalorder %s134, %s137
      %p146 = scmp.eq.s32.totalorder %s19, 1
      %p147 = por %p145, %p146
      %p148 = scmp.ne.s32.totalorder %s137, %s138
      %p149 = scmp.eq.s32.totalorder %s19, 0
      %p150 = por %p148, %p149
      %p151 = scmp.ne.s32.totalorder %s137, %s138
      %p152 = scmp.eq.s32.totalorder %s20, 1
      %p153 = por %p151, %p152
      %p155 = scmp.ne.s32.totalorder %s138, %s154
      %p156 = scmp.eq.s32.totalorder %s20, 0
      %p157 = por %p155, %p156
      %p158 = scmp.le.s32.totalorder 1, %s14
      %p159 = scmp.lt.s32.totalorder %s14, 3
      %p160 = pnand %p158, %p159
      %p161 = pneg %p160
      // Predicated region
      $region9: #{patch_embed_forward.3} parent=5 // pred_check
        _
      $region10: #{patch_embed_forward.3} parent=5 // pred_check_branch
        %163 = sbr.rel (%p160) target = $region12
      $region11: #{patch_embed_forward.3} parent=5 // pred_region
        %s164 = ssub.s32 %s14, 1
        // Predicated region
        $region13: #{patch_embed_forward.3} parent=11 // pred_check
          %p165 = pneg %p61
        $region14: #{patch_embed_forward.3} parent=11 // pred_check_branch
          %167 = sbr.rel (%p165) target = $region16
        $region15: #{patch_embed_forward.3} parent=11 // pred_region
          _
        $region16: #{patch_embed_forward.3} parent=11 // pred_fallthru
          _
        // Predicated region
        $region17: #{patch_embed_forward.3} parent=11 // pred_check
          %p168 = pneg %p82
        $region18: #{patch_embed_forward.3} parent=11 // pred_check_branch
          %170 = sbr.rel (%p168) target = $region20
        $region19: #{patch_embed_forward.3} parent=11 // pred_region
          _
        $region20: #{patch_embed_forward.3} parent=11 // pred_fallthru
          _
        // Predicated region
        $region21: #{patch_embed_forward.3} parent=11 // pred_check
          %p171 = pneg %p103
        $region22: #{patch_embed_forward.3} parent=11 // pred_check_branch
          %173 = sbr.rel (%p171) target = $region24
        $region23: #{patch_embed_forward.3} parent=11 // pred_region
          _
        $region24: #{patch_embed_forward.3} parent=11 // pred_fallthru
          _
        // Predicated region
        $region25: #{patch_embed_forward.3} parent=11 // pred_check
          %p174 = pneg %p124
        $region26: #{patch_embed_forward.3} parent=11 // pred_check_branch
          %176 = sbr.rel (%p174) target = $region28
        $region27: #{patch_embed_forward.3} parent=11 // pred_region
          _
        $region28: #{patch_embed_forward.3} parent=11 // pred_fallthru
          _
      $region12: #{patch_embed_forward.3} parent=5 // pred_fallthru
        _
      %p177 = scmp.lt.s32.totalorder %s14, 2
      // Predicated region
      $region29: #{patch_embed_forward.3} parent=5 // pred_check
        %p178 = pneg %p177
      $region30: #{patch_embed_forward.3} parent=5 // pred_check_branch
        %180 = sbr.rel (%p178) target = $region32
      $region31: #{patch_embed_forward.3} parent=5 // pred_region
        // Predicated region
        $region33: #{patch_embed_forward.3} parent=31 // pred_check
          %p181 = pneg %p34
        $region34: #{patch_embed_forward.3} parent=31 // pred_check_branch
          %183 = sbr.rel (%p181) target = $region36
        $region35: #{patch_embed_forward.3} parent=31 // pred_region
          %p184 = scmp.lt.s32.totalorder %s14, 1
          %s185 = scalar_select %p184, %s14, 1
          %s186 = smul.addr %s185, 6
          %s187 = smul.addr %s186, 8
          %s188 = scalar_lea.vmem %s0, %s187
        $region36: #{patch_embed_forward.3} parent=31 // pred_fallthru
          _
      $region32: #{patch_embed_forward.3} parent=5 // pred_fallthru
        _
      %p189 = scmp.le.s32.totalorder 1, %s14
      %p190 = scmp.lt.s32.totalorder %s14, 3
      %p191 = pnand %p189, %p190
      %p192 = pneg %p191
      // Predicated region
      $region37: #{patch_embed_forward.3} parent=5 // pred_check
        _
      $region38: #{patch_embed_forward.3} parent=5 // pred_check_branch
        %194 = sbr.rel (%p191) target = $region40
      $region39: #{patch_embed_forward.3} parent=5 // pred_region
        %s195 = ssub.s32 %s14, 1
        %p196 = scmp.lt.s32.totalorder %s19, 1
        %s197 = scalar_select %p196, %s19, 1
        %s198 = smul.addr %s197, 6
        %s199 = smul.addr %s198, 8
        %s200 = scalar_lea.vmem %s0, %s199
        %p201 = pneg %p40
        %p202 = pneg %p37
        %p203 = pneg %p61
        %p204 = pneg %p58
        %p205 = pneg %p82
        %p206 = pneg %p79
        %p207 = pneg %p103
        %p208 = pneg %p100
        %p209 = pneg %p124
        %p210 = pneg %p121
        %p211 = pneg %p150
        %p212 = pneg %p147
        %s213 = sand.u32 %s137, 1
        %s214 = scalar_lea.sflag [#allocation3], %s213
        %s215 = sand.u32 %s137, 1
        %s216 = smul.addr %s215, 16
        %s217 = scalar_lea.vmem [#allocation2], %s216
        %p218 = scmp.lt.s32.totalorder %s19, 1
        %s219 = scalar_select %p218, %s19, 1
        %s220 = smul.addr %s219, 6
        %s221 = smul.addr %s220, 8
        %s222 = scalar_lea.vmem %s0, %s221
        %v223 = vld [vmem:[%s1] sm:$0xff]
        %v224 = vld [vmem:[%s1 + $0x8] sm:$0x1]
        %v225 = vld [vmem:[%s2] sm:$0x1]
        %v226 = vld [vmem:[%s3] sm:$0x1]
        %v227 = vld [vmem:[%s4] sm:$0x1]
        %s228 = scalar_lea.vmem %s222, 8
        %v229 = vld [vmem:[%s228 + $0x1] sm:$0xf]
        %v230 = vld [vmem:[%s228 + $0x9] sm:$0xf]
        %v231 = vld [vmem:[%s228 + $0x11] sm:$0xf]
        %v232 = vld [vmem:[%s228 + $0x19] sm:$0xf]
        %v233 = vlaneseq
        %v234 = vshrl.u32 %v233, 7
        %v235 = vsub.s32 4, %v234
        %v236 = vrot.slane %v223, %v235
        %v237 = vmul.f32 %v229, %v236
        %v238 = vmul.f32 %v230, %v236
        %v239 = vmul.f32 %v231, %v236
        %v240 = vmul.f32 %v232, %v236
        %v241 = vld [vmem:[%s222] sm:$0xf]
        %v242 = vld [vmem:[%s222 + $0x8] sm:$0xf]
        %v243 = vld [vmem:[%s222 + $0x10] sm:$0xf]
        %v244 = vld [vmem:[%s222 + $0x18] sm:$0xf]
        %v245 = vlaneseq
        %v246 = vshrl.u32 %v245, 7
        %v247 = vsub.s32 0, %v246
        %v248 = vrot.slane %v223, %v247
        %v249 = vmul.f32 %v241, %v248
        %v250 = vmul.f32 %v242, %v248
        %v251 = vmul.f32 %v243, %v248
        %v252 = vmul.f32 %v244, %v248
        %v253 = vadd.f32 %v237, %v249
        %v254 = vadd.f32 %v238, %v250
        %v255 = vadd.f32 %v239, %v251
        %v256 = vadd.f32 %v240, %v252
        %v257 = vld [vmem:[%s222 + $0x1] sm:$0xf]
        %v258 = vld [vmem:[%s222 + $0x9] sm:$0xf]
        %v259 = vld [vmem:[%s222 + $0x11] sm:$0xf]
        %v260 = vld [vmem:[%s222 + $0x19] sm:$0xf]
        %v261 = vlaneseq
        %v262 = vshrl.u32 %v261, 7
        %v263 = vsub.s32 1, %v262
        %v264 = vrot.slane %v223, %v263
        %v265 = vmul.f32 %v257, %v264
        %v266 = vmul.f32 %v258, %v264
        %v267 = vmul.f32 %v259, %v264
        %v268 = vmul.f32 %v260, %v264
        %v269 = vadd.f32 %v253, %v265
        %v270 = vadd.f32 %v254, %v266
        %v271 = vadd.f32 %v255, %v267
        %v272 = vadd.f32 %v256, %v268
        %v273 = vld [vmem:[%s222 + $0x2] sm:$0xf]
        %v274 = vld [vmem:[%s222 + $0xa] sm:$0xf]
        %v275 = vld [vmem:[%s222 + $0x12] sm:$0xf]
        %v276 = vld [vmem:[%s222 + $0x1a] sm:$0xf]
        %v277 = vlaneseq
        %v278 = vshrl.u32 %v277, 7
        %v279 = vsub.s32 2, %v278
        %v280 = vrot.slane %v223, %v279
        %v281 = vmul.f32 %v273, %v280
        %v282 = vmul.f32 %v274, %v280
        %v283 = vmul.f32 %v275, %v280
        %v284 = vmul.f32 %v276, %v280
        %v285 = vadd.f32 %v269, %v281
        %v286 = vadd.f32 %v270, %v282
        %v287 = vadd.f32 %v271, %v283
        %v288 = vadd.f32 %v272, %v284
        %v289 = vld [vmem:[%s228] sm:$0xf]
        %v290 = vld [vmem:[%s228 + $0x8] sm:$0xf]
        %v291 = vld [vmem:[%s228 + $0x10] sm:$0xf]
        %v292 = vld [vmem:[%s228 + $0x18] sm:$0xf]
        %v293 = vlaneseq
        %v294 = vshrl.u32 %v293, 7
        %v295 = vsub.s32 3, %v294
        %v296 = vrot.slane %v223, %v295
        %v297 = vmul.f32 %v289, %v296
        %v298 = vmul.f32 %v290, %v296
        %v299 = vmul.f32 %v291, %v296
        %v300 = vmul.f32 %v292, %v296
        %v301 = vadd.f32 %v285, %v297
        %v302 = vadd.f32 %v286, %v298
        %v303 = vadd.f32 %v287, %v299
        %v304 = vadd.f32 %v288, %v300
        %v305 = vld [vmem:[%s228 + $0x2] sm:$0xf]
        %v306 = vld [vmem:[%s228 + $0xa] sm:$0xf]
        %v307 = vld [vmem:[%s228 + $0x12] sm:$0xf]
        %v308 = vld [vmem:[%s228 + $0x1a] sm:$0xf]
        %v309 = vlaneseq
        %v310 = vshrl.u32 %v309, 7
        %v311 = vsub.s32 5, %v310
        %v312 = vrot.slane %v223, %v311
        %v313 = vmul.f32 %v305, %v312
        %v314 = vmul.f32 %v306, %v312
        %v315 = vmul.f32 %v307, %v312
        %v316 = vmul.f32 %v308, %v312
        %v317 = vadd.f32 %v301, %v313
        %v318 = vadd.f32 %v302, %v314
        %v319 = vadd.f32 %v303, %v315
        %v320 = vadd.f32 %v304, %v316
        %s321 = scalar_lea.vmem %s222, 16
        %v322 = vld [vmem:[%s321] sm:$0xf]
        %v323 = vld [vmem:[%s321 + $0x8] sm:$0xf]
        %v324 = vld [vmem:[%s321 + $0x10] sm:$0xf]
        %v325 = vld [vmem:[%s321 + $0x18] sm:$0xf]
        %v326 = vlaneseq
        %v327 = vshrl.u32 %v326, 7
        %v328 = vsub.s32 6, %v327
        %v329 = vrot.slane %v223, %v328
        %v330 = vmul.f32 %v322, %v329
        %v331 = vmul.f32 %v323, %v329
        %v332 = vmul.f32 %v324, %v329
        %v333 = vmul.f32 %v325, %v329
        %v334 = vadd.f32 %v317, %v330
        %v335 = vadd.f32 %v318, %v331
        %v336 = vadd.f32 %v319, %v332
        %v337 = vadd.f32 %v320, %v333
        %v338 = vld [vmem:[%s321 + $0x1] sm:$0xf]
        %v339 = vld [vmem:[%s321 + $0x9] sm:$0xf]
        %v340 = vld [vmem:[%s321 + $0x11] sm:$0xf]
        %v341 = vld [vmem:[%s321 + $0x19] sm:$0xf]
        %v342 = vlaneseq
        %v343 = vshrl.u32 %v342, 7
        %v344 = vsub.s32 7, %v343
        %v345 = vrot.slane %v223, %v344
        %v346 = vmul.f32 %v338, %v345
        %v347 = vmul.f32 %v339, %v345
        %v348 = vmul.f32 %v340, %v345
        %v349 = vmul.f32 %v341, %v345
        %v350 = vadd.f32 %v334, %v346
        %v351 = vadd.f32 %v335, %v347
        %v352 = vadd.f32 %v336, %v348
        %v353 = vadd.f32 %v337, %v349
        %v354 = vld [vmem:[%s321 + $0x2] sm:$0xf]
        %v355 = vld [vmem:[%s321 + $0xa] sm:$0xf]
        %v356 = vld [vmem:[%s321 + $0x12] sm:$0xf]
        %v357 = vld [vmem:[%s321 + $0x1a] sm:$0xf]
        %v358 = vlaneseq
        %v359 = vshrl.u32 %v358, 7
        %v360 = vsub.s32 0, %v359
        %v361 = vrot.slane %v224, %v360
        %v362 = vmul.f32 %v354, %v361
        %v363 = vmul.f32 %v355, %v361
        %v364 = vmul.f32 %v356, %v361
        %v365 = vmul.f32 %v357, %v361
        %v366 = vadd.f32 %v350, %v362
        %v367 = vadd.f32 %v351, %v363
        %v368 = vadd.f32 %v352, %v364
        %v369 = vadd.f32 %v353, %v365
        %v371 = vlaneseq
        %v372 = vshrl.u32 %v371, 7
        %v373 = vsub.s32 0, %v372
        %v374 = vrot.slane %v225, %v373
        %v376 = vadd.f32 %v366, %v374
        %v377 = vadd.f32 %v367, %v374
        %v378 = vadd.f32 %v368, %v374
        %v379 = vadd.f32 %v369, %v374
        %v380 = vxor.u32 %v376, 2147483648
        %v381 = vxor.u32 %v377, 2147483648
        %v382 = vxor.u32 %v378, 2147483648
        %v383 = vxor.u32 %v379, 2147483648
        %v384 = vmul.f32 %v380, 1.442695
        %v385 = vpow.pop %v384
        %v386 = vmul.f32 %v381, 1.442695
        %v387 = vpow.pop %v386
        %v388 = vmul.f32 %v382, 1.442695
        %v389 = vpow.pop %v388
        %v390 = vmul.f32 %v383, 1.442695
        %v391 = vpow.pop %v390
        %v392 = vadd.f32 %v385, 1.0
        %v393 = vadd.f32 %v387, 1.0
        %v394 = vadd.f32 %v389, 1.0
        %v395 = vadd.f32 %v391, 1.0
        %v396 = vrcp.pop %v392
        %v397 = vmul.f32 1.0, %v396
        %v398 = vrcp.pop %v393
        %v399 = vmul.f32 1.0, %v398
        %v400 = vrcp.pop %v394
        %v401 = vmul.f32 1.0, %v400
        %v402 = vrcp.pop %v395
        %v403 = vmul.f32 1.0, %v402
        %v404 = vmul.f32 %v229, %v397
        %v405 = vmul.f32 %v230, %v399
        %v406 = vmul.f32 %v231, %v401
        %v407 = vmul.f32 %v232, %v403
        %vm408 = vcmask 1043456
        %v409 = vsel %vm408, %v404, 0.0
        %410 = vadd.xlane.f32.xlu0 %v409
        %v411 = vpop.xlane.xlu0 %410
        %v412 = vsel %vm408, %v405, 0.0
        %413 = vadd.xlane.f32.xlu0 %v412
        %v414 = vpop.xlane.xlu0 %413
        %v415 = vsel %vm408, %v406, 0.0
        %416 = vadd.xlane.f32.xlu0 %v415
        %v417 = vpop.xlane.xlu0 %416
        %v418 = vsel %vm408, %v407, 0.0
        %419 = vadd.xlane.f32.xlu0 %v418
        %v420 = vpop.xlane.xlu0 %419
        %v421 = vmul.f32 %v404, %v404
        %v422 = vmul.f32 %v405, %v405
        %v423 = vmul.f32 %v406, %v406
        %v424 = vmul.f32 %v407, %v407
        %v425 = vsel %vm408, %v421, 0.0
        %426 = vadd.xlane.f32.xlu0 %v425
        %v427 = vpop.xlane.xlu0 %426
        %v428 = vsel %vm408, %v422, 0.0
        %429 = vadd.xlane.f32.xlu0 %v428
        %v430 = vpop.xlane.xlu0 %429
        %v431 = vsel %vm408, %v423, 0.0
        %432 = vadd.xlane.f32.xlu0 %v431
        %v433 = vpop.xlane.xlu0 %432
        %v434 = vsel %vm408, %v424, 0.0
        %435 = vadd.xlane.f32.xlu0 %v434
        %v436 = vpop.xlane.xlu0 %435
        %v437 = vmul.f32 %v411, 0.03125
        %v438 = vmul.f32 %v414, 0.03125
        %v439 = vmul.f32 %v417, 0.03125
        %v440 = vmul.f32 %v420, 0.03125
        %v441 = vmul.f32 %v427, 0.03125
        %v442 = vmul.f32 %v430, 0.03125
        %v443 = vmul.f32 %v433, 0.03125
        %v444 = vmul.f32 %v436, 0.03125
        %v445 = vmul.f32 %v437, %v437
        %v446 = vmul.f32 %v438, %v438
        %v447 = vmul.f32 %v439, %v439
        %v448 = vmul.f32 %v440, %v440
        %v449 = vsub.f32 %v441, %v445
        %v450 = vsub.f32 %v442, %v446
        %v451 = vsub.f32 %v443, %v447
        %v452 = vsub.f32 %v444, %v448
        %v453 = vmax.f32 %v449, 0.0
        %v454 = vmax.f32 %v450, 0.0
        %v455 = vmax.f32 %v451, 0.0
        %v456 = vmax.f32 %v452, 0.0
        %v457 = vadd.f32 %v453, 1e-05
        %v458 = vadd.f32 %v454, 1e-05
        %v459 = vadd.f32 %v455, 1e-05
        %v460 = vadd.f32 %v456, 1e-05
        %v461 = vrsqrt.pop %v457
        %v462 = vrsqrt.pop %v458
        %v463 = vrsqrt.pop %v459
        %v464 = vrsqrt.pop %v460
        %v465 = vsub.f32 %v404, %v437
        %v466 = vsub.f32 %v405, %v438
        %v467 = vsub.f32 %v406, %v439
        %v468 = vsub.f32 %v407, %v440
        %v469 = vmul.f32 %v465, %v461
        %v470 = vmul.f32 %v466, %v462
        %v471 = vmul.f32 %v467, %v463
        %v472 = vmul.f32 %v468, %v464
        %v474 = vlaneseq
        %v475 = vshrl.u32 %v474, 7
        %v476 = vsub.s32 0, %v475
        %v477 = vrot.slane %v226, %v476
        %v479 = vmul.f32 %v469, %v477
        %v480 = vmul.f32 %v470, %v477
        %v481 = vmul.f32 %v471, %v477
        %v482 = vmul.f32 %v472, %v477
        %v484 = vlaneseq
        %v485 = vshrl.u32 %v484, 7
        %v486 = vsub.s32 0, %v485
        %v487 = vrot.slane %v227, %v486
        %v489 = vadd.f32 %v479, %v487
        %v490 = vadd.f32 %v480, %v487
        %v491 = vadd.f32 %v481, %v487
        %v492 = vadd.f32 %v482, %v487
        %493 = vst [vmem:[%s217] sm:$0xf] %v489
        %494 = vst [vmem:[%s217 + $0x4] sm:$0xf] %v490
        %495 = vst [vmem:[%s217 + $0x8] sm:$0xf] %v491
        %496 = vst [vmem:[%s217 + $0xc] sm:$0xf] %v492
        %s497 = sand.u32 %s137, 1
        %s498 = scalar_lea.sflag [#allocation3], %s497
        %s499 = sand.u32 %s137, 1
        %s500 = smul.addr %s499, 16
        %s501 = scalar_lea.vmem [#allocation2], %s500
        // Predicated region
        $region41: #{patch_embed_forward.3} parent=39 // pred_check
          %p502 = pneg %p147
        $region42: #{patch_embed_forward.3} parent=39 // pred_check_branch
          %504 = sbr.rel (%p502) target = $region44
        $region43: #{patch_embed_forward.3} parent=39 // pred_region
          %s506 = ssub.s32 256, 256
          %507 = vsyncadd %s498, %s506
          %s508 = smul.addr %s19, 4
          %s509 = smul.addr %s508, 64
          %s510 = scalar_lea.hbm %s5, %s509
          %s511 = sshll.u32 %s501, 4
          %s512 = int_to_ptr.vmem [resolvable:$true] %s511
          %517 = dma.vmem_to_hbm [thread:$0]  %s512, 256, %s510, %s498, 64, 64, 4
        $region44: #{patch_embed_forward.3} parent=39 // pred_fallthru
          _
      $region40: #{patch_embed_forward.3} parent=5 // pred_fallthru
        _
      %p518 = scmp.le.s32.totalorder 2, %s14
      // Predicated region
      $region45: #{patch_embed_forward.3} parent=5 // pred_check
        %p519 = pneg %p518
      $region46: #{patch_embed_forward.3} parent=5 // pred_check_branch
        %521 = sbr.rel (%p519) target = $region48
      $region47: #{patch_embed_forward.3} parent=5 // pred_region
        %s522 = ssub.s32 %s14, 2
        // Predicated region
        $region49: #{patch_embed_forward.3} parent=47 // pred_check
          %p523 = pneg %p153
        $region50: #{patch_embed_forward.3} parent=47 // pred_check_branch
          %525 = sbr.rel (%p523) target = $region52
        $region51: #{patch_embed_forward.3} parent=47 // pred_region
          %s526 = sand.u32 %s138, 1
          %s527 = scalar_lea.sflag [#allocation3], %s526
          %s528 = sand.u32 %s138, 1
          %s529 = smul.addr %s528, 16
          %s530 = scalar_lea.vmem [#allocation2], %s529
          %531 = dma.done %s527, 256
        $region52: #{patch_embed_forward.3} parent=47 // pred_fallthru
          _
      $region48: #{patch_embed_forward.3} parent=5 // pred_fallthru
        _
    $region6: #{patch_embed_forward.3} parent=1 // loop_footer
      %s18 = sadd.s32 1, %s14
    $region7: #{patch_embed_forward.3} parent=1 // loop_footer_branch
      %13 = sbr.rel target = $region3
    $region8: #{patch_embed_forward.3} parent=1 // loop_exit
      _
    %532 = vsyncpa [#allocation3], 1
    %s533 = scalar_lea.sflag [#allocation3], 1
    %534 = vsyncpa %s533, 1

</llo_original>
